<compile_context>
chip_gen: v7x
topology: tpu7x:2x2x1
jax: 0.10.0
libtpu: 0.0.40
codegen_flags: <defaults>
</compile_context>

<pallas_src>
import functools

import jax
import jax.numpy as jnp
from jax.experimental import pallas as pl
from jax.experimental.pallas import tpu as pltpu


def _round_up(x, m):
    return ((x + m - 1) // m) * m


def _cdiv(a, b):
    return -(-a // b)


def _sublane_multiple(dtype):
    # sub-32-bit dtypes pack along sublanes: 8 rows (f32), 16 (bf16/f16), 32 (int8/fp8)
    return max(8, 32 // jnp.dtype(dtype).itemsize)


def _vmem_capacity_bytes():
    try:
        return int(pltpu.get_tpu_info().vmem_capacity_bytes)
    except Exception:
        return 64 << 20  # conservative fallback (v7x per-TensorCore)


_VMEM_CAPACITY = _vmem_capacity_bytes()
_VMEM_BUDGET = max(32 << 20, (_VMEM_CAPACITY * 3) // 4)  # ~48 MiB v7x, ~96 MiB v5e/v6e


def _probe_single_buffered_weights():
    """One-time (import-time) capability probe: can constant-index inputs be
    single-buffered via pipeline_mode=pl.Buffered(1)?  AOT-compiles a tiny kernel."""
    try:
        w_spec = pl.BlockSpec((8, 128), lambda i: (0, 0), pipeline_mode=pl.Buffered(1))

        def _k(x_ref, w_ref, o_ref):
            o_ref[...] = x_ref[...] + w_ref[...]

        fn = pl.pallas_call(
            _k,
            out_shape=jax.ShapeDtypeStruct((16, 128), jnp.float32),
            grid=(2,),
            in_specs=[pl.BlockSpec((8, 128), lambda i: (i, 0)), w_spec],
            out_specs=pl.BlockSpec((8, 128), lambda i: (i, 0)),
        )
        jax.jit(fn).lower(jnp.zeros((16, 128), jnp.float32),
                          jnp.zeros((8, 128), jnp.float32)).compile()
        return True
    except Exception:
        return False


_SINGLE_BUFFER_WEIGHTS = _probe_single_buffered_weights()


# ----------------------------------------------------------------------------- kernel


def residual_block_kernel(x_ref, w_in_ref, b_in_ref, w_out_ref, o_ref):
    x = x_ref[...]                                               # (block_b, n_in)
    # fc_in: x @ W_in^T + b_in  (weights stored pre-transposed: (n_in, n_middle))
    h = jnp.dot(x.astype(w_in_ref.dtype), w_in_ref[...],
                preferred_element_type=jnp.float32)
    h = h + b_in_ref[...].astype(jnp.float32)                    # (1, n_middle) broadcast
    # activation relu6 -> tanh in f32 (VPU clip + EUP tanh: free slots vs MXU)
    h = jnp.tanh(jnp.clip(h, 0.0, 6.0))
    # fc_out: h @ W_out^T (no bias)
    y = jnp.dot(h.astype(w_out_ref.dtype), w_out_ref[...],
                preferred_element_type=jnp.float32)
    o_ref[...] = (x.astype(jnp.float32) + y).astype(o_ref.dtype)


# ---------------------------------------------------------------------------- wrapper


def _vmem_limit_bytes(block_b, n_in, n_mid, x_dtype, w_dtype):
    xb = jnp.dtype(x_dtype).itemsize
    wb = jnp.dtype(w_dtype).itemsize
    io_bytes = 2 * 2 * block_b * n_in * xb                         # x + out tiles, 2x buffered
    w_copies = 1 if _SINGLE_BUFFER_WEIGHTS else 2
    w_bytes = w_copies * (2 * n_in * n_mid + n_mid) * wb           # resident W_in^T, b_in, W_out^T
    h_bytes = 2 * block_b * n_mid * 4                              # f32 intermediates
    total = io_bytes + w_bytes + h_bytes + (8 << 20)               # compiler scratch headroom
    return int(min(max(total, 32 << 20), _VMEM_BUDGET))


def _choose_block_b(B, n_in, n_mid, x_dtype):
    sub = _sublane_multiple(x_dtype)
    # rows such that pipelined x/out tiles + f32 intermediates stay well under the budget
    per_row = 4 * n_in * jnp.dtype(x_dtype).itemsize + 2 * n_mid * 4
    vmem_rows = max(sub, ((_VMEM_BUDGET // 2) // max(per_row, 1)) // sub * sub)
    target = min(1024, vmem_rows)
    if B <= target:
        return B                      # single step; block == full array dim is always legal
    block_b = target                  # already a multiple of the sublane granularity
    steps = _cdiv(B, block_b)
    if steps % 2 == 1:                # prefer an even 'parallel' grid for v7x 2-TC balance
        alt = _round_up(_cdiv(B, steps + 1), sub)
        if alt >= 256:
            block_b = alt
    return block_b


def _residual_block_impl(x, w_in_t, b_in, w_out_t, block_b):
    B, n_in = x.shape
    n_middle = w_in_t.shape[1]
    steps = _cdiv(B, block_b)

    w_kwargs = {"pipeline_mode": pl.Buffered(1)} if _SINGLE_BUFFER_WEIGHTS else {}
    in_specs = [
        pl.BlockSpec((block_b, n_in), lambda i: (i, 0)),                # x tile (pipelined)
        pl.BlockSpec((n_in, n_middle), lambda i: (0, 0), **w_kwargs),   # W_in^T  (resident)
        pl.BlockSpec((1, n_middle), lambda i: (0, 0), **w_kwargs),      # b_in    (resident)
        pl.BlockSpec((n_middle, n_in), lambda i: (0, 0), **w_kwargs),   # W_out^T (resident)
    ]
    out_specs = pl.BlockSpec((block_b, n_in), lambda i: (i, 0))

    xb = jnp.dtype(x.dtype).itemsize
    wb = jnp.dtype(w_in_t.dtype).itemsize
    cost = pl.CostEstimate(
        flops=4 * B * n_in * n_middle,
        transcendentals=B * n_middle,
        bytes_accessed=2 * B * n_in * xb + (2 * n_in * n_middle + n_middle) * wb,
    )

    return pl.pallas_call(
        residual_block_kernel,
        out_shape=jax.ShapeDtypeStruct((B, n_in), x.dtype),
        grid_spec=pltpu.PrefetchScalarGridSpec(
            num_scalar_prefetch=0,
            grid=(steps,),
            in_specs=in_specs,
            out_specs=out_specs,
        ),
        compiler_params=pltpu.CompilerParams(
            dimension_semantics=("parallel",),
            vmem_limit_bytes=_vmem_limit_bytes(block_b, n_in, n_middle,
                                               x.dtype, w_in_t.dtype),
        ),
        cost_estimate=cost,
    )(x, w_in_t, b_in, w_out_t)


@functools.partial(jax.jit, static_argnames=("block_b", "matmul_dtype"))
def residual_block(x, w_in_t, b_in, w_out_t, *, block_b=None, matmul_dtype=None):
    """y = x + fc_out(relu6_tanh(fc_in(x))).

    x: (B, n_in); w_in_t: (n_in, n_middle) [pre-transposed]; b_in: (n_middle,) or (1, n_middle);
    w_out_t: (n_middle, n_in) [pre-transposed].
    matmul_dtype: e.g. jnp.bfloat16 to run the MXU in bf16 (f32 accumulation) on v6e/v7x.
    """
    B, n_in = x.shape
    n_middle = w_in_t.shape[1]
    b_in = b_in.reshape(1, n_middle)

    if matmul_dtype is not None:
        # One cheap weight cast in the wrapper; x is cast per-tile inside the kernel so the
        # x/out HBM traffic is unchanged and accumulation / activation remain f32.
        w_in_t = w_in_t.astype(matmul_dtype)
        w_out_t = w_out_t.astype(matmul_dtype)

    if block_b is None:
        block_b = _choose_block_b(B, n_in, n_middle, x.dtype)
    else:
        sub = _sublane_multiple(x.dtype)
        block_b = max(sub, _round_up(int(block_b), sub))
        if block_b >= B:
            block_b = B               # full-batch block: legal regardless of sublane rounding

    return _residual_block_impl(x, w_in_t, b_in, w_out_t, block_b)


# -------------------------------------------------------------------------- reference


def residual_block_ref(x, w_in_t, b_in, w_out_t):
    h = x @ w_in_t + b_in.reshape(1, -1)
    h = jnp.tanh(jnp.clip(h, 0.0, 6.0))
    return x + h @ w_out_t


def _make_params(key, n_in, n_middle, dtype):
    k_w1, k_b1, k_w2 = jax.random.split(key, 3)
    bound_in = 1.0 / jnp.sqrt(jnp.float32(n_in))
    bound_out = 1.0 / jnp.sqrt(jnp.float32(n_middle))
    # PyTorch Linear init: U(-1/sqrt(fan_in), 1/sqrt(fan_in)); weights stored pre-transposed.
    w_in_t = jax.random.uniform(k_w1, (n_in, n_middle), jnp.float32, -bound_in, bound_in)
    b_in = jax.random.uniform(k_b1, (1, n_middle), jnp.float32, -bound_in, bound_in)
    w_out_t = jax.random.uniform(k_w2, (n_middle, n_in), jnp.float32, -bound_out, bound_out)
    return w_in_t.astype(dtype), b_in.astype(dtype), w_out_t.astype(dtype)


if __name__ == "__main__":
    key = jax.random.PRNGKey(0)
    k1, k2, k3 = jax.random.split(key, 3)

    # Case 1: f32, ragged feature dims kept at native width (no padding), single grid step.
    B, n_in, n_middle = 256, 48, 96
    kx, kp = jax.random.split(k1)
    x = jax.random.normal(kx, (B, n_in), jnp.float32)
    w_in_t, b_in, w_out_t = _make_params(kp, n_in, n_middle, jnp.float32)
    out = jax.block_until_ready(residual_block(x, w_in_t, b_in, w_out_t))
    ref = residual_block_ref(x, w_in_t, b_in, w_out_t)
    assert out.shape == (B, n_in)
    assert jnp.allclose(out, ref, atol=1e-4, rtol=1e-4), "f32 mismatch vs reference"

    # Case 2: bf16 weights/activations, explicit block_b -> multi-step grid with a ragged
    # last batch tile (exercises the cdiv-grid masking path).
    B2, n_in2, n_mid2 = 300, 128, 256
    kx2, kp2 = jax.random.split(k2)
    x2 = jax.random.normal(kx2, (B2, n_in2), jnp.float32).astype(jnp.bfloat16)
    w_in2, b_in2, w_out2 = _make_params(kp2, n_in2, n_mid2, jnp.bfloat16)
    out2 = jax.block_until_ready(residual_block(x2, w_in2, b_in2, w_out2, block_b=128))
    ref2 = residual_block_ref(x2.astype(jnp.float32), w_in2.astype(jnp.float32),
                              b_in2.astype(jnp.float32), w_out2.astype(jnp.float32))
    assert out2.shape == (B2, n_in2)
    assert jnp.allclose(out2.astype(jnp.float32), ref2, atol=5e-2, rtol=5e-2), \
        "bf16 mismatch vs reference"

    # Case 3: f32 inputs with bf16 matmul operands (v6e/v7x fast path), default block_b
    # (1024-row tiles -> an even 2-step 'parallel' grid).
    B3, n_in3, n_mid3 = 2048, 64, 128
    kx3, kp3 = jax.random.split(k3)
    x3 = jax.random.normal(kx3, (B3, n_in3), jnp.float32)
    w_in3, b_in3, w_out3 = _make_params(kp3, n_in3, n_mid3, jnp.float32)
    out3 = jax.block_until_ready(
        residual_block(x3, w_in3, b_in3, w_out3, matmul_dtype=jnp.bfloat16))
    ref3 = residual_block_ref(x3, w_in3, b_in3, w_out3)
    assert out3.shape == (B3, n_in3)
    assert jnp.allclose(out3, ref3, atol=5e-2, rtol=5e-2), "bf16-matmul mismatch vs reference"

    print("KERNEL_OK")
</pallas_src>

<mosaic_0001>
module attributes {stable_mosaic.version = 11 : i64} {
  func.func @residual_block_kernel(%arg0: i32, %arg1: memref<256x48xf32, #tpu.memory_space<vmem>>, %arg2: memref<48x96xf32, #tpu.memory_space<vmem>>, %arg3: memref<1x96xf32, #tpu.memory_space<vmem>>, %arg4: memref<96x48xf32, #tpu.memory_space<vmem>>, %arg5: memref<256x48xf32, #tpu.memory_space<vmem>>) attributes {dimension_semantics = [#tpu.dimension_semantics<parallel>], iteration_bounds = array<i64: 1>, scalar_prefetch = 0 : i64, scratch_operands = 0 : i64, tpu.core_type = #tpu.core_type<tc>, window_params = [{transform_indices = @transform_0, window_bounds = array<i64: 256, 48>}, {pipeline_mode = #tpu.pipeline_mode<synchronous>, transform_indices = @transform_1, window_bounds = array<i64: 48, 96>}, {pipeline_mode = #tpu.pipeline_mode<synchronous>, transform_indices = @transform_2, window_bounds = array<i64: 1, 96>}, {pipeline_mode = #tpu.pipeline_mode<synchronous>, transform_indices = @transform_3, window_bounds = array<i64: 96, 48>}, {transform_indices = @transform_4, window_bounds = array<i64: 256, 48>}]} {
    %c0 = arith.constant 0 : index
    %c0_0 = arith.constant 0 : index
    %0 = vector.load %arg1[%c0, %c0_0] : memref<256x48xf32, #tpu.memory_space<vmem>>, vector<256x48xf32>
    %c0_1 = arith.constant 0 : index
    %c0_2 = arith.constant 0 : index
    %1 = vector.load %arg2[%c0_1, %c0_2] : memref<48x96xf32, #tpu.memory_space<vmem>>, vector<48x96xf32>
    %cst = arith.constant dense<0.000000e+00> : vector<256x96xf32>
    %2 = tpu.matmul %0, %1, %cst {dimension_numbers = #tpu.dot_dimension_numbers<[1], [0], [0], [1], [0, 0, 1, 1], [], []>} : vector<256x48xf32>, vector<48x96xf32>, vector<256x96xf32> -> vector<256x96xf32>
    %c0_3 = arith.constant 0 : index
    %c0_4 = arith.constant 0 : index
    %3 = vector.load %arg3[%c0_3, %c0_4] : memref<1x96xf32, #tpu.memory_space<vmem>>, vector<1x96xf32>
    %4 = vector.broadcast %3 : vector<1x96xf32> to vector<256x96xf32>
    %5 = arith.addf %2, %4 : vector<256x96xf32>
    %cst_5 = arith.constant 0.000000e+00 : f32
    %cst_6 = arith.constant 6.000000e+00 : f32
    %6 = vector.broadcast %cst_5 : f32 to vector<256x96xf32>
    %7 = arith.maximumf %6, %5 : vector<256x96xf32>
    %8 = vector.broadcast %cst_6 : f32 to vector<256x96xf32>
    %9 = arith.minimumf %8, %7 : vector<256x96xf32>
    %10 = math.tanh %9 : vector<256x96xf32>
    %c0_7 = arith.constant 0 : index
    %c0_8 = arith.constant 0 : index
    %11 = vector.load %arg4[%c0_7, %c0_8] : memref<96x48xf32, #tpu.memory_space<vmem>>, vector<96x48xf32>
    %cst_9 = arith.constant dense<0.000000e+00> : vector<256x48xf32>
    %12 = tpu.matmul %10, %11, %cst_9 {dimension_numbers = #tpu.dot_dimension_numbers<[1], [0], [0], [1], [0, 0, 1, 1], [], []>} : vector<256x96xf32>, vector<96x48xf32>, vector<256x48xf32> -> vector<256x48xf32>
    %13 = arith.addf %0, %12 : vector<256x48xf32>
    %c0_10 = arith.constant 0 : index
    %c0_11 = arith.constant 0 : index
    %14 = vector.load %arg5[%c0_10, %c0_11] : memref<256x48xf32, #tpu.memory_space<vmem>>, vector<256x48xf32>
    tpu.vector_store %arg5[%c0_10, %c0_11], %13 {strides = array<i32>} : memref<256x48xf32, #tpu.memory_space<vmem>>, vector<256x48xf32>,
    return
  }
  func.func @transform_0(%arg0: i32) -> (i32, i32) {
    %c0_i32 = arith.constant 0 : i32
    %c0_i32_0 = arith.constant 0 : i32
    return %arg0, %c0_i32 : i32, i32
  }
  func.func @transform_1(%arg0: i32) -> (i32, i32) {
    %c0_i32 = arith.constant 0 : i32
    %c0_i32_0 = arith.constant 0 : i32
    %c0_i32_1 = arith.constant 0 : i32
    return %c0_i32, %c0_i32_0 : i32, i32
  }
  func.func @transform_2(%arg0: i32) -> (i32, i32) {
    %c0_i32 = arith.constant 0 : i32
    %c0_i32_0 = arith.constant 0 : i32
    %c0_i32_1 = arith.constant 0 : i32
    return %c0_i32, %c0_i32_0 : i32, i32
  }
  func.func @transform_3(%arg0: i32) -> (i32, i32) {
    %c0_i32 = arith.constant 0 : i32
    %c0_i32_0 = arith.constant 0 : i32
    %c0_i32_1 = arith.constant 0 : i32
    return %c0_i32, %c0_i32_0 : i32, i32
  }
  func.func @transform_4(%arg0: i32) -> (i32, i32) {
    %c0_i32 = arith.constant 0 : i32
    %c0_i32_0 = arith.constant 0 : i32
    return %arg0, %c0_i32 : i32, i32
  }
}

</mosaic_0001>

<llo_original>
// kernel: residual_block.1
$region0: #{residual_block.1}
  #allocation0 [shape = 'u32[]', space=smem, size = 0x4, offset = 0x4, fixed_abs, tag = 'smem constant byte address 0x4 - core index']
  #allocation1 [shape = 'u32[144,128]{1,0:T(1,128)}', space=vmem, size = 0x12000, scoped, tag = 'internal scratch']
  %s0 = inlined_call_operand.vmem [shape: f32[256,48], index: 0, kind: input, shape index: {}]
  %s1 = inlined_call_operand.vmem [shape: f32[48,96], index: 1, kind: input, shape index: {}]
  %s2 = inlined_call_operand.vmem [shape: f32[1,96], index: 2, kind: input, shape index: {}]
  %s3 = inlined_call_operand.vmem [shape: f32[96,48], index: 3, kind: input, shape index: {}]
  %s4 = inlined_call_operand.vmem [shape: f32[256,48], index: 4, kind: output, shape index: {}]
  %s5 = sld [smem:[#allocation0]]
  $region26: #{residual_block.1} parent=0
    _
  %s7 = ssub.s32 1, %s5
  %s8 = scalar_select 0, %s7, %s5
  // Predicated region
  $region2: #{residual_block.1} parent=0 // pred_check
    _
  $region3: #{residual_block.1} parent=0 // pred_check_branch
    %10 = sbr.rel (0) target = $region5
  $region4: #{residual_block.1} parent=0 // pred_region
    _
  $region5: #{residual_block.1} parent=0 // pred_fallthru
    _
  // Predicated region
  $region6: #{residual_block.1} parent=0 // pred_check
    _
  $region7: #{residual_block.1} parent=0 // pred_check_branch
    %12 = sbr.rel (0) target = $region9
  $region8: #{residual_block.1} parent=0 // pred_region
    _
  $region9: #{residual_block.1} parent=0 // pred_fallthru
    _
  // Predicated region
  $region10: #{residual_block.1} parent=0 // pred_check
    _
  $region11: #{residual_block.1} parent=0 // pred_check_branch
    %14 = sbr.rel (0) target = $region13
  $region12: #{residual_block.1} parent=0 // pred_region
    _
  $region13: #{residual_block.1} parent=0 // pred_fallthru
    _
  // Predicated region
  $region14: #{residual_block.1} parent=0 // pred_check
    _
  $region15: #{residual_block.1} parent=0 // pred_check_branch
    %16 = sbr.rel (0) target = $region17
  $region16: #{residual_block.1} parent=0 // pred_region
    _
  $region17: #{residual_block.1} parent=0 // pred_fallthru
    _
  %v17 = vld [vmem:[%s0] sm:$0xff]
  %v18 = vld [vmem:[%s0 + $0x8] sm:$0xff]
  %v19 = vld [vmem:[%s0 + $0x10] sm:$0xff]
  %v20 = vld [vmem:[%s0 + $0x18] sm:$0xff]
  %v21 = vld [vmem:[%s0 + $0x20] sm:$0xff]
  %v22 = vld [vmem:[%s0 + $0x28] sm:$0xff]
  %v23 = vld [vmem:[%s0 + $0x30] sm:$0xff]
  %v24 = vld [vmem:[%s0 + $0x38] sm:$0xff]
  %v25 = vld [vmem:[%s0 + $0x40] sm:$0xff]
  %v26 = vld [vmem:[%s0 + $0x48] sm:$0xff]
  %v27 = vld [vmem:[%s0 + $0x50] sm:$0xff]
  %v28 = vld [vmem:[%s0 + $0x58] sm:$0xff]
  %v29 = vld [vmem:[%s0 + $0x60] sm:$0xff]
  %v30 = vld [vmem:[%s0 + $0x68] sm:$0xff]
  %v31 = vld [vmem:[%s0 + $0x70] sm:$0xff]
  %v32 = vld [vmem:[%s0 + $0x78] sm:$0xff]
  %v33 = vld [vmem:[%s0 + $0x80] sm:$0xff]
  %v34 = vld [vmem:[%s0 + $0x88] sm:$0xff]
  %v35 = vld [vmem:[%s0 + $0x90] sm:$0xff]
  %v36 = vld [vmem:[%s0 + $0x98] sm:$0xff]
  %v37 = vld [vmem:[%s0 + $0xa0] sm:$0xff]
  %v38 = vld [vmem:[%s0 + $0xa8] sm:$0xff]
  %v39 = vld [vmem:[%s0 + $0xb0] sm:$0xff]
  %v40 = vld [vmem:[%s0 + $0xb8] sm:$0xff]
  %v41 = vld [vmem:[%s0 + $0xc0] sm:$0xff]
  %v42 = vld [vmem:[%s0 + $0xc8] sm:$0xff]
  %v43 = vld [vmem:[%s0 + $0xd0] sm:$0xff]
  %v44 = vld [vmem:[%s0 + $0xd8] sm:$0xff]
  %v45 = vld [vmem:[%s0 + $0xe0] sm:$0xff]
  %v46 = vld [vmem:[%s0 + $0xe8] sm:$0xff]
  %v47 = vld [vmem:[%s0 + $0xf0] sm:$0xff]
  %v48 = vld [vmem:[%s0 + $0xf8] sm:$0xff]
  %v49 = vld [vmem:[%s1] sm:$0xff]
  %v50 = vld [vmem:[%s1 + $0x8] sm:$0xff]
  %v51 = vld [vmem:[%s1 + $0x10] sm:$0xff]
  %v52 = vld [vmem:[%s1 + $0x18] sm:$0xff]
  %v53 = vld [vmem:[%s1 + $0x20] sm:$0xff]
  %v54 = vld [vmem:[%s1 + $0x28] sm:$0xff]
  %v55 = vld [vmem:[%s2] sm:$0x1]
  %v57 = vlaneseq
  %v58 = vshrl.u32 %v57, 7
  %v59 = vsub.s32 0, %v58
  %v60 = vrot.slane %v55, %v59
  %vm62 = vcmask 392192
  %v64 = vsel %vm62, %v17, 0
  %v67 = vsel %vm62, %v18, 0
  %v70 = vsel %vm62, %v19, 0
  %v73 = vsel %vm62, %v20, 0
  %v76 = vsel %vm62, %v21, 0
  %v79 = vsel %vm62, %v22, 0
  %v82 = vsel %vm62, %v23, 0
  %v85 = vsel %vm62, %v24, 0
  %v88 = vsel %vm62, %v25, 0
  %v91 = vsel %vm62, %v26, 0
  %v94 = vsel %vm62, %v27, 0
  %v97 = vsel %vm62, %v28, 0
  %v100 = vsel %vm62, %v29, 0
  %v103 = vsel %vm62, %v30, 0
  %v106 = vsel %vm62, %v31, 0
  %v109 = vsel %vm62, %v32, 0
  %v112 = vsel %vm62, %v33, 0
  %v115 = vsel %vm62, %v34, 0
  %v118 = vsel %vm62, %v35, 0
  %v121 = vsel %vm62, %v36, 0
  %v124 = vsel %vm62, %v37, 0
  %v127 = vsel %vm62, %v38, 0
  %v130 = vsel %vm62, %v39, 0
  %v133 = vsel %vm62, %v40, 0
  %v136 = vsel %vm62, %v41, 0
  %v139 = vsel %vm62, %v42, 0
  %v142 = vsel %vm62, %v43, 0
  %v145 = vsel %vm62, %v44, 0
  %v148 = vsel %vm62, %v45, 0
  %v151 = vsel %vm62, %v46, 0
  %v154 = vsel %vm62, %v47, 0
  %v157 = vsel %vm62, %v48, 0
  %159 = vmatprep.subr.mxu0 0.0
  %160 = vmatpush1.msra.mxu0 %v49
  %161 = vmatprep.subr.mxu0 0.0
  %162 = vmatpush1.msra.mxu0 %v50
  %163 = vmatprep.subr.mxu0 0.0
  %164 = vmatpush1.msra.mxu0 %v51
  %165 = vmatprep.subr.mxu0 0.0
  %166 = vmatpush1.msra.mxu0 %v52
  %167 = vmatprep.subr.mxu0 0.0
  %168 = vmatpush1.msra.mxu0 %v53
  %169 = vmatprep.subr.mxu0 0.0
  %170 = vmatpush1.msra.mxu0 %v54
  %171 = vmatprep.subr.mxu0 0.0
  %172 = vmatpush1.msra.mxu0 0.0
  %173 = vmatprep.subr.mxu0 0.0
  %174 = vmatpush1.msra.mxu0 0.0
  %175 = vmatprep.subr.mxu0 0.0
  %176 = vmatpush1.msra.mxu0 0.0
  %177 = vmatprep.subr.mxu0 0.0
  %178 = vmatpush1.msra.mxu0 0.0
  %179 = vmatprep.subr.mxu0 0.0
  %180 = vmatpush1.msra.mxu0 0.0
  %181 = vmatprep.subr.mxu0 0.0
  %182 = vmatpush1.msra.mxu0 0.0
  %183 = vmatprep.subr.mxu0 0.0
  %184 = vmatpush1.msra.mxu0 0.0
  %185 = vmatprep.subr.mxu0 0.0
  %186 = vmatpush1.msra.mxu0 0.0
  %187 = vmatprep.subr.mxu0 0.0
  %188 = vmatpush1.msra.mxu0 0.0
  %189 = vmatprep.subr.mxu0 0.0
  %190 = vmatpush1.msra.mxu0 0.0
  %191 = vmatprep.subr.mxu0 0.0
  %192 = vmatpush1.msra.mxu0 0.0
  %193 = vmatprep.subr.mxu0 0.0
  %194 = vmatpush1.msra.mxu0 0.0
  %195 = vmatprep.subr.mxu0 0.0
  %196 = vmatpush1.msra.mxu0 0.0
  %197 = vmatprep.subr.mxu0 0.0
  %198 = vmatpush1.msra.mxu0 0.0
  %199 = vmatprep.subr.mxu0 0.0
  %200 = vmatpush1.msra.mxu0 0.0
  %201 = vmatprep.subr.mxu0 0.0
  %202 = vmatpush1.msra.mxu0 0.0
  %203 = vmatprep.subr.mxu0 0.0
  %204 = vmatpush1.msra.mxu0 0.0
  %205 = vmatprep.subr.mxu0 0.0
  %206 = vmatpush1.msra.mxu0 0.0
  %207 = vmatprep.subr.mxu0 0.0
  %208 = vmatpush1.msra.mxu0 0.0
  %209 = vmatprep.subr.mxu0 0.0
  %210 = vmatpush1.msra.mxu0 0.0
  %211 = vmatprep.subr.mxu0 0.0
  %212 = vmatpush1.msra.mxu0 0.0
  %213 = vmatprep.subr.mxu0 0.0
  %214 = vmatpush1.msra.mxu0 0.0
  %215 = vmatprep.subr.mxu0 0.0
  %216 = vmatpush1.msra.mxu0 0.0
  %217 = vmatprep.subr.mxu0 0.0
  %218 = vmatpush1.msra.mxu0 0.0
  %219 = vmatprep.subr.mxu0 0.0
  %220 = vmatpush1.msra.mxu0 0.0
  %221 = vmatprep.subr.mxu0 0.0
  %222 = vmatpush1.msra.mxu0 0.0
  %223 = vmatprep.mubr.f32.mxu0 0.0
  %224 = vmatmul.mubr.f32.gmra.mrb[0].mxu0 %v64
  %v225 = vpop.f32.mrb[0].mxu0
  %v226 = vadd.f32 %v60, %v225
  %v227 = vpop.f32.mrb[0].mxu0
  %228 = vmatprep.mubr.f32.mxu0 0.0
  %229 = vmatmul.mubr.f32.gmra.mrb[0].mxu0 %v67
  %v230 = vpop.f32.mrb[0].mxu0
  %v231 = vadd.f32 %v60, %v230
  %v232 = vpop.f32.mrb[0].mxu0
  %233 = vmatprep.mubr.f32.mxu0 0.0
  %234 = vmatmul.mubr.f32.gmra.mrb[0].mxu0 %v70
  %v235 = vpop.f32.mrb[0].mxu0
  %v236 = vadd.f32 %v60, %v235
  %v237 = vpop.f32.mrb[0].mxu0
  %238 = vmatprep.mubr.f32.mxu0 0.0
  %239 = vmatmul.mubr.f32.gmra.mrb[0].mxu0 %v73
  %v240 = vpop.f32.mrb[0].mxu0
  %v241 = vadd.f32 %v60, %v240
  %v242 = vpop.f32.mrb[0].mxu0
  %243 = vmatprep.mubr.f32.mxu0 0.0
  %244 = vmatmul.mubr.f32.gmra.mrb[0].mxu0 %v76
  %v245 = vpop.f32.mrb[0].mxu0
  %v246 = vadd.f32 %v60, %v245
  %v247 = vpop.f32.mrb[0].mxu0
  %248 = vmatprep.mubr.f32.mxu0 0.0
  %249 = vmatmul.mubr.f32.gmra.mrb[0].mxu0 %v79
  %v250 = vpop.f32.mrb[0].mxu0
  %v251 = vadd.f32 %v60, %v250
  %v252 = vpop.f32.mrb[0].mxu0
  %253 = vmatprep.mubr.f32.mxu0 0.0
  %254 = vmatmul.mubr.f32.gmra.mrb[0].mxu0 %v82
  %v255 = vpop.f32.mrb[0].mxu0
  %v256 = vadd.f32 %v60, %v255
  %v257 = vpop.f32.mrb[0].mxu0
  %258 = vmatprep.mubr.f32.mxu0 0.0
  %259 = vmatmul.mubr.f32.gmra.mrb[0].mxu0 %v85
  %v260 = vpop.f32.mrb[0].mxu0
  %v261 = vadd.f32 %v60, %v260
  %v262 = vpop.f32.mrb[0].mxu0
  %263 = vmatprep.mubr.f32.mxu0 0.0
  %264 = vmatmul.mubr.f32.gmra.mrb[0].mxu0 %v88
  %v265 = vpop.f32.mrb[0].mxu0
  %v266 = vadd.f32 %v60, %v265
  %v267 = vpop.f32.mrb[0].mxu0
  %268 = vmatprep.mubr.f32.mxu0 0.0
  %269 = vmatmul.mubr.f32.gmra.mrb[0].mxu0 %v91
  %v270 = vpop.f32.mrb[0].mxu0
  %v271 = vadd.f32 %v60, %v270
  %v272 = vpop.f32.mrb[0].mxu0
  %273 = vmatprep.mubr.f32.mxu0 0.0
  %274 = vmatmul.mubr.f32.gmra.mrb[0].mxu0 %v94
  %v275 = vpop.f32.mrb[0].mxu0
  %v276 = vadd.f32 %v60, %v275
  %v277 = vpop.f32.mrb[0].mxu0
  %278 = vmatprep.mubr.f32.mxu0 0.0
  %279 = vmatmul.mubr.f32.gmra.mrb[0].mxu0 %v97
  %v280 = vpop.f32.mrb[0].mxu0
  %v281 = vadd.f32 %v60, %v280
  %v282 = vpop.f32.mrb[0].mxu0
  %283 = vmatprep.mubr.f32.mxu0 0.0
  %284 = vmatmul.mubr.f32.gmra.mrb[0].mxu0 %v100
  %v285 = vpop.f32.mrb[0].mxu0
  %v286 = vadd.f32 %v60, %v285
  %v287 = vpop.f32.mrb[0].mxu0
  %288 = vmatprep.mubr.f32.mxu0 0.0
  %289 = vmatmul.mubr.f32.gmra.mrb[0].mxu0 %v103
  %v290 = vpop.f32.mrb[0].mxu0
  %v291 = vadd.f32 %v60, %v290
  %v292 = vpop.f32.mrb[0].mxu0
  %293 = vmatprep.mubr.f32.mxu0 0.0
  %294 = vmatmul.mubr.f32.gmra.mrb[0].mxu0 %v106
  %v295 = vpop.f32.mrb[0].mxu0
  %v296 = vadd.f32 %v60, %v295
  %v297 = vpop.f32.mrb[0].mxu0
  %298 = vmatprep.mubr.f32.mxu0 0.0
  %299 = vmatmul.mubr.f32.gmra.mrb[0].mxu0 %v109
  %v300 = vpop.f32.mrb[0].mxu0
  %v301 = vadd.f32 %v60, %v300
  %v302 = vpop.f32.mrb[0].mxu0
  %303 = vmatprep.mubr.f32.mxu0 0.0
  %304 = vmatmul.mubr.f32.gmra.mrb[0].mxu0 %v112
  %v305 = vpop.f32.mrb[0].mxu0
  %v306 = vadd.f32 %v60, %v305
  %v307 = vpop.f32.mrb[0].mxu0
  %308 = vmatprep.mubr.f32.mxu0 0.0
  %309 = vmatmul.mubr.f32.gmra.mrb[0].mxu0 %v115
  %v310 = vpop.f32.mrb[0].mxu0
  %v311 = vadd.f32 %v60, %v310
  %v312 = vpop.f32.mrb[0].mxu0
  %313 = vmatprep.mubr.f32.mxu0 0.0
  %314 = vmatmul.mubr.f32.gmra.mrb[0].mxu0 %v118
  %v315 = vpop.f32.mrb[0].mxu0
  %v316 = vadd.f32 %v60, %v315
  %v317 = vpop.f32.mrb[0].mxu0
  %318 = vmatprep.mubr.f32.mxu0 0.0
  %319 = vmatmul.mubr.f32.gmra.mrb[0].mxu0 %v121
  %v320 = vpop.f32.mrb[0].mxu0
  %v321 = vadd.f32 %v60, %v320
  %v322 = vpop.f32.mrb[0].mxu0
  %323 = vmatprep.mubr.f32.mxu0 0.0
  %324 = vmatmul.mubr.f32.gmra.mrb[0].mxu0 %v124
  %v325 = vpop.f32.mrb[0].mxu0
  %v326 = vadd.f32 %v60, %v325
  %v327 = vpop.f32.mrb[0].mxu0
  %328 = vmatprep.mubr.f32.mxu0 0.0
  %329 = vmatmul.mubr.f32.gmra.mrb[0].mxu0 %v127
  %v330 = vpop.f32.mrb[0].mxu0
  %v331 = vadd.f32 %v60, %v330
  %v332 = vpop.f32.mrb[0].mxu0
  %333 = vmatprep.mubr.f32.mxu0 0.0
  %334 = vmatmul.mubr.f32.gmra.mrb[0].mxu0 %v130
  %v335 = vpop.f32.mrb[0].mxu0
  %v336 = vadd.f32 %v60, %v335
  %v337 = vpop.f32.mrb[0].mxu0
  %338 = vmatprep.mubr.f32.mxu0 0.0
  %339 = vmatmul.mubr.f32.gmra.mrb[0].mxu0 %v133
  %v340 = vpop.f32.mrb[0].mxu0
  %v341 = vadd.f32 %v60, %v340
  %v342 = vpop.f32.mrb[0].mxu0
  %343 = vmatprep.mubr.f32.mxu0 0.0
  %344 = vmatmul.mubr.f32.gmra.mrb[0].mxu0 %v136
  %v345 = vpop.f32.mrb[0].mxu0
  %v346 = vadd.f32 %v60, %v345
  %v347 = vpop.f32.mrb[0].mxu0
  %348 = vmatprep.mubr.f32.mxu0 0.0
  %349 = vmatmul.mubr.f32.gmra.mrb[0].mxu0 %v139
  %v350 = vpop.f32.mrb[0].mxu0
  %v351 = vadd.f32 %v60, %v350
  %v352 = vpop.f32.mrb[0].mxu0
  %353 = vmatprep.mubr.f32.mxu0 0.0
  %354 = vmatmul.mubr.f32.gmra.mrb[0].mxu0 %v142
  %v355 = vpop.f32.mrb[0].mxu0
  %v356 = vadd.f32 %v60, %v355
  %v357 = vpop.f32.mrb[0].mxu0
  %358 = vmatprep.mubr.f32.mxu0 0.0
  %359 = vmatmul.mubr.f32.gmra.mrb[0].mxu0 %v145
  %v360 = vpop.f32.mrb[0].mxu0
  %v361 = vadd.f32 %v60, %v360
  %v362 = vpop.f32.mrb[0].mxu0
  %363 = vmatprep.mubr.f32.mxu0 0.0
  %364 = vmatmul.mubr.f32.gmra.mrb[0].mxu0 %v148
  %v365 = vpop.f32.mrb[0].mxu0
  %v366 = vadd.f32 %v60, %v365
  %v367 = vpop.f32.mrb[0].mxu0
  %368 = vmatprep.mubr.f32.mxu0 0.0
  %369 = vmatmul.mubr.f32.gmra.mrb[0].mxu0 %v151
  %v370 = vpop.f32.mrb[0].mxu0
  %v371 = vadd.f32 %v60, %v370
  %v372 = vpop.f32.mrb[0].mxu0
  %373 = vmatprep.mubr.f32.mxu0 0.0
  %374 = vmatmul.mubr.f32.gmra.mrb[0].mxu0 %v154
  %v375 = vpop.f32.mrb[0].mxu0
  %v376 = vadd.f32 %v60, %v375
  %v377 = vpop.f32.mrb[0].mxu0
  %378 = vmatprep.mubr.f32.mxu0 0.0
  %379 = vmatmul.mubr.f32.gmra.mrb[0].mxu0 %v157
  %v380 = vpop.f32.mrb[0].mxu0
  %v381 = vadd.f32 %v60, %v380
  %v382 = vpop.f32.mrb[0].mxu0
  %383 = vdwg.mxu0
  %v384 = vmax.f32 %v226, 0.0
  %v385 = vmax.f32 %v231, 0.0
  %v386 = vmax.f32 %v236, 0.0
  %v387 = vmax.f32 %v241, 0.0
  %v388 = vmax.f32 %v246, 0.0
  %v389 = vmax.f32 %v251, 0.0
  %v390 = vmax.f32 %v256, 0.0
  %v391 = vmax.f32 %v261, 0.0
  %v392 = vmax.f32 %v266, 0.0
  %v393 = vmax.f32 %v271, 0.0
  %v394 = vmax.f32 %v276, 0.0
  %v395 = vmax.f32 %v281, 0.0
  %v396 = vmax.f32 %v286, 0.0
  %v397 = vmax.f32 %v291, 0.0
  %v398 = vmax.f32 %v296, 0.0
  %v399 = vmax.f32 %v301, 0.0
  %v400 = vmax.f32 %v306, 0.0
  %v401 = vmax.f32 %v311, 0.0
  %v402 = vmax.f32 %v316, 0.0
  %v403 = vmax.f32 %v321, 0.0
  %v404 = vmax.f32 %v326, 0.0
  %v405 = vmax.f32 %v331, 0.0
  %v406 = vmax.f32 %v336, 0.0
  %v407 = vmax.f32 %v341, 0.0
  %v408 = vmax.f32 %v346, 0.0
  %v409 = vmax.f32 %v351, 0.0
  %v410 = vmax.f32 %v356, 0.0
  %v411 = vmax.f32 %v361, 0.0
  %v412 = vmax.f32 %v366, 0.0
  %v413 = vmax.f32 %v371, 0.0
  %v414 = vmax.f32 %v376, 0.0
  %v415 = vmax.f32 %v381, 0.0
  %v416 = vmin.f32 %v384, 6.0
  %v417 = vmin.f32 %v385, 6.0
  %v418 = vmin.f32 %v386, 6.0
  %v419 = vmin.f32 %v387, 6.0
  %v420 = vmin.f32 %v388, 6.0
  %v421 = vmin.f32 %v389, 6.0
  %v422 = vmin.f32 %v390, 6.0
  %v423 = vmin.f32 %v391, 6.0
  %v424 = vmin.f32 %v392, 6.0
  %v425 = vmin.f32 %v393, 6.0
  %v426 = vmin.f32 %v394, 6.0
  %v427 = vmin.f32 %v395, 6.0
  %v428 = vmin.f32 %v396, 6.0
  %v429 = vmin.f32 %v397, 6.0
  %v430 = vmin.f32 %v398, 6.0
  %v431 = vmin.f32 %v399, 6.0
  %v432 = vmin.f32 %v400, 6.0
  %v433 = vmin.f32 %v401, 6.0
  %v434 = vmin.f32 %v402, 6.0
  %v435 = vmin.f32 %v403, 6.0
  %v436 = vmin.f32 %v404, 6.0
  %v437 = vmin.f32 %v405, 6.0
  %v438 = vmin.f32 %v406, 6.0
  %v439 = vmin.f32 %v407, 6.0
  %v440 = vmin.f32 %v408, 6.0
  %v441 = vmin.f32 %v409, 6.0
  %v442 = vmin.f32 %v410, 6.0
  %v443 = vmin.f32 %v411, 6.0
  %v444 = vmin.f32 %v412, 6.0
  %v445 = vmin.f32 %v413, 6.0
  %v446 = vmin.f32 %v414, 6.0
  %v447 = vmin.f32 %v415, 6.0
  %v448 = vtanh.pop %v416
  %v449 = vtanh.pop %v417
  %v450 = vtanh.pop %v418
  %v451 = vtanh.pop %v419
  %v452 = vtanh.pop %v420
  %v453 = vtanh.pop %v421
  %v454 = vtanh.pop %v422
  %v455 = vtanh.pop %v423
  %v456 = vtanh.pop %v424
  %v457 = vtanh.pop %v425
  %v458 = vtanh.pop %v426
  %v459 = vtanh.pop %v427
  %v460 = vtanh.pop %v428
  %v461 = vtanh.pop %v429
  %v462 = vtanh.pop %v430
  %v463 = vtanh.pop %v431
  %v464 = vtanh.pop %v432
  %v465 = vtanh.pop %v433
  %v466 = vtanh.pop %v434
  %v467 = vtanh.pop %v435
  %v468 = vtanh.pop %v436
  %v469 = vtanh.pop %v437
  %v470 = vtanh.pop %v438
  %v471 = vtanh.pop %v439
  %v472 = vtanh.pop %v440
  %v473 = vtanh.pop %v441
  %v474 = vtanh.pop %v442
  %v475 = vtanh.pop %v443
  %v476 = vtanh.pop %v444
  %v477 = vtanh.pop %v445
  %v478 = vtanh.pop %v446
  %v479 = vtanh.pop %v447
  %v480 = vld [vmem:[%s3] sm:$0xff]
  %v481 = vld [vmem:[%s3 + $0x8] sm:$0xff]
  %v482 = vld [vmem:[%s3 + $0x10] sm:$0xff]
  %v483 = vld [vmem:[%s3 + $0x18] sm:$0xff]
  %v484 = vld [vmem:[%s3 + $0x20] sm:$0xff]
  %v485 = vld [vmem:[%s3 + $0x28] sm:$0xff]
  %v486 = vld [vmem:[%s3 + $0x30] sm:$0xff]
  %v487 = vld [vmem:[%s3 + $0x38] sm:$0xff]
  %v488 = vld [vmem:[%s3 + $0x40] sm:$0xff]
  %v489 = vld [vmem:[%s3 + $0x48] sm:$0xff]
  %v490 = vld [vmem:[%s3 + $0x50] sm:$0xff]
  %v491 = vld [vmem:[%s3 + $0x58] sm:$0xff]
  %vm492 = vcmask 785408
  %v494 = vsel %vm492, %v448, 0
  %v497 = vsel %vm492, %v449, 0
  %v500 = vsel %vm492, %v450, 0
  %v503 = vsel %vm492, %v451, 0
  %v506 = vsel %vm492, %v452, 0
  %v509 = vsel %vm492, %v453, 0
  %v512 = vsel %vm492, %v454, 0
  %v515 = vsel %vm492, %v455, 0
  %v518 = vsel %vm492, %v456, 0
  %v521 = vsel %vm492, %v457, 0
  %v524 = vsel %vm492, %v458, 0
  %v527 = vsel %vm492, %v459, 0
  %v530 = vsel %vm492, %v460, 0
  %v533 = vsel %vm492, %v461, 0
  %v536 = vsel %vm492, %v462, 0
  %v539 = vsel %vm492, %v463, 0
  %v542 = vsel %vm492, %v464, 0
  %v545 = vsel %vm492, %v465, 0
  %v548 = vsel %vm492, %v466, 0
  %v551 = vsel %vm492, %v467, 0
  %v554 = vsel %vm492, %v468, 0
  %v557 = vsel %vm492, %v469, 0
  %v560 = vsel %vm492, %v470, 0
  %v563 = vsel %vm492, %v471, 0
  %v566 = vsel %vm492, %v472, 0
  %v569 = vsel %vm492, %v473, 0
  %v572 = vsel %vm492, %v474, 0
  %v575 = vsel %vm492, %v475, 0
  %v578 = vsel %vm492, %v476, 0
  %v581 = vsel %vm492, %v477, 0
  %v584 = vsel %vm492, %v478, 0
  %v587 = vsel %vm492, %v479, 0
  %589 = vmatprep.subr.mxu0 0.0
  %590 = vmatpush1.msra.mxu0 %v480
  %591 = vmatprep.subr.mxu0 0.0
  %592 = vmatpush1.msra.mxu0 %v481
  %593 = vmatprep.subr.mxu0 0.0
  %594 = vmatpush1.msra.mxu0 %v482
  %595 = vmatprep.subr.mxu0 0.0
  %596 = vmatpush1.msra.mxu0 %v483
  %597 = vmatprep.subr.mxu0 0.0
  %598 = vmatpush1.msra.mxu0 %v484
  %599 = vmatprep.subr.mxu0 0.0
  %600 = vmatpush1.msra.mxu0 %v485
  %601 = vmatprep.subr.mxu0 0.0
  %602 = vmatpush1.msra.mxu0 %v486
  %603 = vmatprep.subr.mxu0 0.0
  %604 = vmatpush1.msra.mxu0 %v487
  %605 = vmatprep.subr.mxu0 0.0
  %606 = vmatpush1.msra.mxu0 %v488
  %607 = vmatprep.subr.mxu0 0.0
  %608 = vmatpush1.msra.mxu0 %v489
  %609 = vmatprep.subr.mxu0 0.0
  %610 = vmatpush1.msra.mxu0 %v490
  %611 = vmatprep.subr.mxu0 0.0
  %612 = vmatpush1.msra.mxu0 %v491
  %613 = vmatprep.subr.mxu0 0.0
  %614 = vmatpush1.msra.mxu0 0.0
  %615 = vmatprep.subr.mxu0 0.0
  %616 = vmatpush1.msra.mxu0 0.0
  %617 = vmatprep.subr.mxu0 0.0
  %618 = vmatpush1.msra.mxu0 0.0
  %619 = vmatprep.subr.mxu0 0.0
  %620 = vmatpush1.msra.mxu0 0.0
  %621 = vmatprep.subr.mxu0 0.0
  %622 = vmatpush1.msra.mxu0 0.0
  %623 = vmatprep.subr.mxu0 0.0
  %624 = vmatpush1.msra.mxu0 0.0
  %625 = vmatprep.subr.mxu0 0.0
  %626 = vmatpush1.msra.mxu0 0.0
  %627 = vmatprep.subr.mxu0 0.0
  %628 = vmatpush1.msra.mxu0 0.0
  %629 = vmatprep.subr.mxu0 0.0
  %630 = vmatpush1.msra.mxu0 0.0
  %631 = vmatprep.subr.mxu0 0.0
  %632 = vmatpush1.msra.mxu0 0.0
  %633 = vmatprep.subr.mxu0 0.0
  %634 = vmatpush1.msra.mxu0 0.0
  %635 = vmatprep.subr.mxu0 0.0
  %636 = vmatpush1.msra.mxu0 0.0
  %637 = vmatprep.subr.mxu0 0.0
  %638 = vmatpush1.msra.mxu0 0.0
  %639 = vmatprep.subr.mxu0 0.0
  %640 = vmatpush1.msra.mxu0 0.0
  %641 = vmatprep.subr.mxu0 0.0
  %642 = vmatpush1.msra.mxu0 0.0
  %643 = vmatprep.subr.mxu0 0.0
  %644 = vmatpush1.msra.mxu0 0.0
  %645 = vmatprep.subr.mxu0 0.0
  %646 = vmatpush1.msra.mxu0 0.0
  %647 = vmatprep.subr.mxu0 0.0
  %648 = vmatpush1.msra.mxu0 0.0
  %649 = vmatprep.subr.mxu0 0.0
  %650 = vmatpush1.msra.mxu0 0.0
  %651 = vmatprep.subr.mxu0 0.0
  %652 = vmatpush1.msra.mxu0 0.0
  %653 = vmatprep.mubr.f32.mxu0 0.0
  %654 = vmatmul.mubr.f32.gmra.mrb[0].mxu0 %v494
  %v655 = vpop.f32.mrb[0].mxu0
  %v656 = vadd.f32 0.0, %v655
  %v657 = vpop.f32.mrb[0].mxu0
  %658 = vmatprep.mubr.f32.mxu0 0.0
  %659 = vmatmul.mubr.f32.gmra.mrb[0].mxu0 %v497
  %v660 = vpop.f32.mrb[0].mxu0
  %v661 = vadd.f32 0.0, %v660
  %v662 = vpop.f32.mrb[0].mxu0
  %663 = vmatprep.mubr.f32.mxu0 0.0
  %664 = vmatmul.mubr.f32.gmra.mrb[0].mxu0 %v500
  %v665 = vpop.f32.mrb[0].mxu0
  %v666 = vadd.f32 0.0, %v665
  %v667 = vpop.f32.mrb[0].mxu0
  %668 = vmatprep.mubr.f32.mxu0 0.0
  %669 = vmatmul.mubr.f32.gmra.mrb[0].mxu0 %v503
  %v670 = vpop.f32.mrb[0].mxu0
  %v671 = vadd.f32 0.0, %v670
  %v672 = vpop.f32.mrb[0].mxu0
  %673 = vmatprep.mubr.f32.mxu0 0.0
  %674 = vmatmul.mubr.f32.gmra.mrb[0].mxu0 %v506
  %v675 = vpop.f32.mrb[0].mxu0
  %v676 = vadd.f32 0.0, %v675
  %v677 = vpop.f32.mrb[0].mxu0
  %678 = vmatprep.mubr.f32.mxu0 0.0
  %679 = vmatmul.mubr.f32.gmra.mrb[0].mxu0 %v509
  %v680 = vpop.f32.mrb[0].mxu0
  %v681 = vadd.f32 0.0, %v680
  %v682 = vpop.f32.mrb[0].mxu0
  %683 = vmatprep.mubr.f32.mxu0 0.0
  %684 = vmatmul.mubr.f32.gmra.mrb[0].mxu0 %v512
  %v685 = vpop.f32.mrb[0].mxu0
  %v686 = vadd.f32 0.0, %v685
  %v687 = vpop.f32.mrb[0].mxu0
  %688 = vmatprep.mubr.f32.mxu0 0.0
  %689 = vmatmul.mubr.f32.gmra.mrb[0].mxu0 %v515
  %v690 = vpop.f32.mrb[0].mxu0
  %v691 = vadd.f32 0.0, %v690
  %v692 = vpop.f32.mrb[0].mxu0
  %693 = vmatprep.mubr.f32.mxu0 0.0
  %694 = vmatmul.mubr.f32.gmra.mrb[0].mxu0 %v518
  %v695 = vpop.f32.mrb[0].mxu0
  %v696 = vadd.f32 0.0, %v695
  %v697 = vpop.f32.mrb[0].mxu0
  %698 = vmatprep.mubr.f32.mxu0 0.0
  %699 = vmatmul.mubr.f32.gmra.mrb[0].mxu0 %v521
  %v700 = vpop.f32.mrb[0].mxu0
  %v701 = vadd.f32 0.0, %v700
  %v702 = vpop.f32.mrb[0].mxu0
  %703 = vmatprep.mubr.f32.mxu0 0.0
  %704 = vmatmul.mubr.f32.gmra.mrb[0].mxu0 %v524
  %v705 = vpop.f32.mrb[0].mxu0
  %v706 = vadd.f32 0.0, %v705
  %v707 = vpop.f32.mrb[0].mxu0
  %708 = vmatprep.mubr.f32.mxu0 0.0
  %709 = vmatmul.mubr.f32.gmra.mrb[0].mxu0 %v527
  %v710 = vpop.f32.mrb[0].mxu0
  %v711 = vadd.f32 0.0, %v710
  %v712 = vpop.f32.mrb[0].mxu0
  %713 = vmatprep.mubr.f32.mxu0 0.0
  %714 = vmatmul.mubr.f32.gmra.mrb[0].mxu0 %v530
  %v715 = vpop.f32.mrb[0].mxu0
  %v716 = vadd.f32 0.0, %v715
  %v717 = vpop.f32.mrb[0].mxu0
  %718 = vmatprep.mubr.f32.mxu0 0.0
  %719 = vmatmul.mubr.f32.gmra.mrb[0].mxu0 %v533
  %v720 = vpop.f32.mrb[0].mxu0
  %v721 = vadd.f32 0.0, %v720
  %v722 = vpop.f32.mrb[0].mxu0
  %723 = vmatprep.mubr.f32.mxu0 0.0
  %724 = vmatmul.mubr.f32.gmra.mrb[0].mxu0 %v536
  %v725 = vpop.f32.mrb[0].mxu0
  %v726 = vadd.f32 0.0, %v725
  %v727 = vpop.f32.mrb[0].mxu0
  %728 = vmatprep.mubr.f32.mxu0 0.0
  %729 = vmatmul.mubr.f32.gmra.mrb[0].mxu0 %v539
  %v730 = vpop.f32.mrb[0].mxu0
  %v731 = vadd.f32 0.0, %v730
  %v732 = vpop.f32.mrb[0].mxu0
  %733 = vmatprep.mubr.f32.mxu0 0.0
  %734 = vmatmul.mubr.f32.gmra.mrb[0].mxu0 %v542
  %v735 = vpop.f32.mrb[0].mxu0
  %v736 = vadd.f32 0.0, %v735
  %v737 = vpop.f32.mrb[0].mxu0
  %738 = vmatprep.mubr.f32.mxu0 0.0
  %739 = vmatmul.mubr.f32.gmra.mrb[0].mxu0 %v545
  %v740 = vpop.f32.mrb[0].mxu0
  %v741 = vadd.f32 0.0, %v740
  %v742 = vpop.f32.mrb[0].mxu0
  %743 = vmatprep.mubr.f32.mxu0 0.0
  %744 = vmatmul.mubr.f32.gmra.mrb[0].mxu0 %v548
  %v745 = vpop.f32.mrb[0].mxu0
  %v746 = vadd.f32 0.0, %v745
  %v747 = vpop.f32.mrb[0].mxu0
  %748 = vmatprep.mubr.f32.mxu0 0.0
  %749 = vmatmul.mubr.f32.gmra.mrb[0].mxu0 %v551
  %v750 = vpop.f32.mrb[0].mxu0
  %v751 = vadd.f32 0.0, %v750
  %v752 = vpop.f32.mrb[0].mxu0
  %753 = vmatprep.mubr.f32.mxu0 0.0
  %754 = vmatmul.mubr.f32.gmra.mrb[0].mxu0 %v554
  %v755 = vpop.f32.mrb[0].mxu0
  %v756 = vadd.f32 0.0, %v755
  %v757 = vpop.f32.mrb[0].mxu0
  %758 = vmatprep.mubr.f32.mxu0 0.0
  %759 = vmatmul.mubr.f32.gmra.mrb[0].mxu0 %v557
  %v760 = vpop.f32.mrb[0].mxu0
  %v761 = vadd.f32 0.0, %v760
  %v762 = vpop.f32.mrb[0].mxu0
  %763 = vmatprep.mubr.f32.mxu0 0.0
  %764 = vmatmul.mubr.f32.gmra.mrb[0].mxu0 %v560
  %v765 = vpop.f32.mrb[0].mxu0
  %v766 = vadd.f32 0.0, %v765
  %v767 = vpop.f32.mrb[0].mxu0
  %768 = vmatprep.mubr.f32.mxu0 0.0
  %769 = vmatmul.mubr.f32.gmra.mrb[0].mxu0 %v563
  %v770 = vpop.f32.mrb[0].mxu0
  %v771 = vadd.f32 0.0, %v770
  %v772 = vpop.f32.mrb[0].mxu0
  %773 = vmatprep.mubr.f32.mxu0 0.0
  %774 = vmatmul.mubr.f32.gmra.mrb[0].mxu0 %v566
  %v775 = vpop.f32.mrb[0].mxu0
  %v776 = vadd.f32 0.0, %v775
  %v777 = vpop.f32.mrb[0].mxu0
  %778 = vmatprep.mubr.f32.mxu0 0.0
  %779 = vmatmul.mubr.f32.gmra.mrb[0].mxu0 %v569
  %v780 = vpop.f32.mrb[0].mxu0
  %v781 = vadd.f32 0.0, %v780
  %v782 = vpop.f32.mrb[0].mxu0
  %783 = vmatprep.mubr.f32.mxu0 0.0
  %784 = vmatmul.mubr.f32.gmra.mrb[0].mxu0 %v572
  %v785 = vpop.f32.mrb[0].mxu0
  %v786 = vadd.f32 0.0, %v785
  %v787 = vpop.f32.mrb[0].mxu0
  %788 = vmatprep.mubr.f32.mxu0 0.0
  %789 = vmatmul.mubr.f32.gmra.mrb[0].mxu0 %v575
  %v790 = vpop.f32.mrb[0].mxu0
  %v791 = vadd.f32 0.0, %v790
  %v792 = vpop.f32.mrb[0].mxu0
  %793 = vmatprep.mubr.f32.mxu0 0.0
  %794 = vmatmul.mubr.f32.gmra.mrb[0].mxu0 %v578
  %v795 = vpop.f32.mrb[0].mxu0
  %v796 = vadd.f32 0.0, %v795
  %v797 = vpop.f32.mrb[0].mxu0
  %798 = vmatprep.mubr.f32.mxu0 0.0
  %799 = vmatmul.mubr.f32.gmra.mrb[0].mxu0 %v581
  %v800 = vpop.f32.mrb[0].mxu0
  %v801 = vadd.f32 0.0, %v800
  %v802 = vpop.f32.mrb[0].mxu0
  %803 = vmatprep.mubr.f32.mxu0 0.0
  %804 = vmatmul.mubr.f32.gmra.mrb[0].mxu0 %v584
  %v805 = vpop.f32.mrb[0].mxu0
  %v806 = vadd.f32 0.0, %v805
  %v807 = vpop.f32.mrb[0].mxu0
  %808 = vmatprep.mubr.f32.mxu0 0.0
  %809 = vmatmul.mubr.f32.gmra.mrb[0].mxu0 %v587
  %v810 = vpop.f32.mrb[0].mxu0
  %v811 = vadd.f32 0.0, %v810
  %v812 = vpop.f32.mrb[0].mxu0
  %813 = vdwg.mxu0
  %v814 = vadd.f32 %v17, %v656
  %v815 = vadd.f32 %v18, %v661
  %v816 = vadd.f32 %v19, %v666
  %v817 = vadd.f32 %v20, %v671
  %v818 = vadd.f32 %v21, %v676
  %v819 = vadd.f32 %v22, %v681
  %v820 = vadd.f32 %v23, %v686
  %v821 = vadd.f32 %v24, %v691
  %v822 = vadd.f32 %v25, %v696
  %v823 = vadd.f32 %v26, %v701
  %v824 = vadd.f32 %v27, %v706
  %v825 = vadd.f32 %v28, %v711
  %v826 = vadd.f32 %v29, %v716
  %v827 = vadd.f32 %v30, %v721
  %v828 = vadd.f32 %v31, %v726
  %v829 = vadd.f32 %v32, %v731
  %v830 = vadd.f32 %v33, %v736
  %v831 = vadd.f32 %v34, %v741
  %v832 = vadd.f32 %v35, %v746
  %v833 = vadd.f32 %v36, %v751
  %v834 = vadd.f32 %v37, %v756
  %v835 = vadd.f32 %v38, %v761
  %v836 = vadd.f32 %v39, %v766
  %v837 = vadd.f32 %v40, %v771
  %v838 = vadd.f32 %v41, %v776
  %v839 = vadd.f32 %v42, %v781
  %v840 = vadd.f32 %v43, %v786
  %v841 = vadd.f32 %v44, %v791
  %v842 = vadd.f32 %v45, %v796
  %v843 = vadd.f32 %v46, %v801
  %v844 = vadd.f32 %v47, %v806
  %v845 = vadd.f32 %v48, %v811
  %846 = vst.msk [vmem:[%s4] sm:$0xff] %vm62, %v814
  %847 = vst.msk [vmem:[%s4 + $0x8] sm:$0xff] %vm62, %v815
  %848 = vst.msk [vmem:[%s4 + $0x10] sm:$0xff] %vm62, %v816
  %849 = vst.msk [vmem:[%s4 + $0x18] sm:$0xff] %vm62, %v817
  %850 = vst.msk [vmem:[%s4 + $0x20] sm:$0xff] %vm62, %v818
  %851 = vst.msk [vmem:[%s4 + $0x28] sm:$0xff] %vm62, %v819
  %852 = vst.msk [vmem:[%s4 + $0x30] sm:$0xff] %vm62, %v820
  %853 = vst.msk [vmem:[%s4 + $0x38] sm:$0xff] %vm62, %v821
  %854 = vst.msk [vmem:[%s4 + $0x40] sm:$0xff] %vm62, %v822
  %855 = vst.msk [vmem:[%s4 + $0x48] sm:$0xff] %vm62, %v823
  %856 = vst.msk [vmem:[%s4 + $0x50] sm:$0xff] %vm62, %v824
  %857 = vst.msk [vmem:[%s4 + $0x58] sm:$0xff] %vm62, %v825
  %858 = vst.msk [vmem:[%s4 + $0x60] sm:$0xff] %vm62, %v826
  %859 = vst.msk [vmem:[%s4 + $0x68] sm:$0xff] %vm62, %v827
  %860 = vst.msk [vmem:[%s4 + $0x70] sm:$0xff] %vm62, %v828
  %861 = vst.msk [vmem:[%s4 + $0x78] sm:$0xff] %vm62, %v829
  %862 = vst.msk [vmem:[%s4 + $0x80] sm:$0xff] %vm62, %v830
  %863 = vst.msk [vmem:[%s4 + $0x88] sm:$0xff] %vm62, %v831
  %864 = vst.msk [vmem:[%s4 + $0x90] sm:$0xff] %vm62, %v832
  %865 = vst.msk [vmem:[%s4 + $0x98] sm:$0xff] %vm62, %v833
  %866 = vst.msk [vmem:[%s4 + $0xa0] sm:$0xff] %vm62, %v834
  %867 = vst.msk [vmem:[%s4 + $0xa8] sm:$0xff] %vm62, %v835
  %868 = vst.msk [vmem:[%s4 + $0xb0] sm:$0xff] %vm62, %v836
  %869 = vst.msk [vmem:[%s4 + $0xb8] sm:$0xff] %vm62, %v837
  %870 = vst.msk [vmem:[%s4 + $0xc0] sm:$0xff] %vm62, %v838
  %871 = vst.msk [vmem:[%s4 + $0xc8] sm:$0xff] %vm62, %v839
  %872 = vst.msk [vmem:[%s4 + $0xd0] sm:$0xff] %vm62, %v840
  %873 = vst.msk [vmem:[%s4 + $0xd8] sm:$0xff] %vm62, %v841
  %874 = vst.msk [vmem:[%s4 + $0xe0] sm:$0xff] %vm62, %v842
  %875 = vst.msk [vmem:[%s4 + $0xe8] sm:$0xff] %vm62, %v843
  %876 = vst.msk [vmem:[%s4 + $0xf0] sm:$0xff] %vm62, %v844
  %877 = vst.msk [vmem:[%s4 + $0xf8] sm:$0xff] %vm62, %v845
  // Predicated region
  $region18: #{residual_block.1} parent=0 // pred_check
    _
  $region19: #{residual_block.1} parent=0 // pred_check_branch
    %879 = sbr.rel (0) target = $region21
  $region20: #{residual_block.1} parent=0 // pred_region
    _
  $region21: #{residual_block.1} parent=0 // pred_fallthru
    _
  // Predicated region
  $region22: #{residual_block.1} parent=0 // pred_check
    _
  $region23: #{residual_block.1} parent=0 // pred_check_branch
    %881 = sbr.rel (0) target = $region25
  $region24: #{residual_block.1} parent=0 // pred_region
    _
  $region25: #{residual_block.1} parent=0 // pred_fallthru
    _

</llo_original>
